<compile_context>
chip_gen: v7x
topology: tpu7x:2x2x1
jax: 0.10.0
libtpu: 0.0.40
codegen_flags: <defaults>
</compile_context>

<pallas_src>
import numpy as np
import jax
import jax.numpy as jnp
from jax.experimental import pallas as pl
from jax.experimental.pallas import tpu as pltpu


# ----------------------------------------------------------------------------
# DFT matrices for rfft / irfft with norm='ortho'
# ----------------------------------------------------------------------------
def _dft_matrices(n):
    """fc, fs: (n, nf) forward real/imag DFT;  icr, ici: (nf, n) inverse DFT."""
    nf = n // 2 + 1
    t = np.arange(n, dtype=np.float64)[:, None]
    k = np.arange(nf, dtype=np.float64)[None, :]
    ang = 2.0 * np.pi * t * k / n
    scale = 1.0 / np.sqrt(n)
    fc = np.cos(ang) * scale          # real part of rfft
    fs = -np.sin(ang) * scale         # imag part of rfft
    w = np.full((nf,), 2.0)
    w[0] = 1.0
    if n % 2 == 0:
        w[-1] = 1.0                   # DC / Nyquist counted once (matches irfft)
    ang_i = 2.0 * np.pi * np.arange(nf)[:, None] * np.arange(n)[None, :] / n
    icr = (w[:, None] * np.cos(ang_i)) * scale
    ici = (-w[:, None] * np.sin(ang_i)) * scale
    return (jnp.asarray(fc, jnp.float32), jnp.asarray(fs, jnp.float32),
            jnp.asarray(icr, jnp.float32), jnp.asarray(ici, jnp.float32))


def _pick_tile(n, target=256):
    """Largest multiple of 128 <= target that divides n (else n itself)."""
    if n % 128 == 0:
        t = min(target, n)
        t -= t % 128
        while t >= 128:
            if n % t == 0:
                return t
            t -= 128
    return n


# ----------------------------------------------------------------------------
# Kernel 1: (kernel_size, 1) reflect-pad conv == one small-weight matmul
# ----------------------------------------------------------------------------
def _conv_kernel(w_ref, xcol_ref, out_ref):
    out_ref[...] = jnp.dot(w_ref[...], xcol_ref[...],
                           preferred_element_type=jnp.float32)


def _conv_matmul(wcat, xcol):
    m, kc = wcat.shape
    n = xcol.shape[1]
    tn = _pick_tile(n)
    return pl.pallas_call(
        _conv_kernel,
        out_shape=jax.ShapeDtypeStruct((m, n), jnp.float32),
        grid=(n // tn,),
        in_specs=[pl.BlockSpec((m, kc), lambda i: (0, 0)),
                  pl.BlockSpec((kc, tn), lambda i: (0, i))],
        out_specs=pl.BlockSpec((m, tn), lambda i: (0, i)),
        compiler_params=pltpu.CompilerParams(
            dimension_semantics=("parallel",)),
    )(wcat, xcol)


# ----------------------------------------------------------------------------
# Kernel 2: forward DFT (fused re/im) + BatchNorm2d(train) + ReLU + inverse DFT
# ----------------------------------------------------------------------------
def _spectral_kernel(a_ref, fdft_ref, gamma_ref, beta_ref, icr_ref, ici_ref,
                     out_ref):
    co2 = gamma_ref.shape[0]               # number of conv output channels
    bh = a_ref.shape[0] // co2             # B * H
    wf = fdft_ref.shape[1]                 # W // 2 + 1
    cobh = out_ref.shape[0]                # Co * B * H   (Co = co2 // 2)

    # rFFT (ortho): one matmul, contraction K = 2*W (real|imag halves fused).
    z = jnp.dot(a_ref[...], fdft_ref[...],
                preferred_element_type=jnp.float32)           # (co2*bh, wf)
    z3 = z.reshape(co2, bh, wf)

    # BatchNorm2d, training-mode batch stats (biased variance, eps=1e-5),
    # single-pass sum / sum-of-squares per channel; affine gamma/beta; ReLU.
    inv_n = 1.0 / float(bh * wf)
    s = jnp.sum(jnp.sum(z3, axis=2, keepdims=True), axis=1, keepdims=True)
    ss = jnp.sum(jnp.sum(z3 * z3, axis=2, keepdims=True), axis=1, keepdims=True)
    mean = s * inv_n
    var = jnp.maximum(ss * inv_n - mean * mean, 0.0)
    scale = gamma_ref[...] * jax.lax.rsqrt(var + 1e-5)
    shift = beta_ref[...] - mean * scale
    y = jnp.maximum(z3 * scale + shift, 0.0)

    # Inverse ortho rFFT (n = W) as dense inverse-DFT matmuls.  Row blocks
    # 0..Co-1 hold the "real" conv channels, Co..2Co-1 the "imag" ones
    # (see the output-channel permutation in the wrapper).
    y2 = y.reshape(co2 * bh, wf)
    out_ref[...] = (
        jnp.dot(y2[:cobh], icr_ref[...], preferred_element_type=jnp.float32)
        + jnp.dot(y2[cobh:], ici_ref[...], preferred_element_type=jnp.float32))


# ----------------------------------------------------------------------------
# One branch (== SeparableFourierUnit.process_branch)
# ----------------------------------------------------------------------------
def _branch_apply(x, w_full, gamma, beta, kernel_size=3):
    """x: (B, C, H, W) f32 -- conv along H (reflect pad), rFFT/irFFT along W.
    w_full: (Co2, 2*C, K);  returns (B, Co2 // 2, H, W)."""
    B, C, H, W = x.shape
    K = kernel_size
    pad = K // 2
    Wf = W // 2 + 1
    Co2 = w_full.shape[0]
    Co = Co2 // 2
    BH = B * H

    fc, fs, icr, ici = _dft_matrices(W)

    # --- parameter prep (glue): permute the conv-output channels so that all
    #     "real" channels (even o2) come first, then all "imag" channels (odd
    #     o2); split the input-channel axis into the halves that multiply the
    #     Re / Im parts of the rFFT.  Weight stays tiny: (2*Co2, C*K).
    perm = np.concatenate([np.arange(0, Co2, 2), np.arange(1, Co2, 2)])
    wp = w_full[perm]                                        # (Co2, 2C, K)
    wcat = jnp.concatenate(
        [wp[:, 0::2, :].reshape(Co2, C * K),                 # weights on Re
         wp[:, 1::2, :].reshape(Co2, C * K)], axis=0)        # weights on Im
    gamma_p = gamma[perm].reshape(Co2, 1, 1).astype(jnp.float32)
    beta_p = beta[perm].reshape(Co2, 1, 1).astype(jnp.float32)
    fdft = jnp.concatenate([fc, fs], axis=0)                 # (2W, Wf)

    # --- activation prep (glue): spatial im2col along H with reflect padding.
    xp = jnp.pad(x, ((0, 0), (0, 0), (pad, pad), (0, 0)), mode="reflect")
    cols = jnp.stack([xp[:, :, dk:dk + H, :] for dk in range(K)], axis=2)
    xcol = cols.transpose(1, 2, 0, 3, 4).reshape(C * K, BH * W)   # rows (c,dk)

    # --- kernel 1: the conv, lane-dense N = B*H*W, bf16 inputs / f32 acc.
    a = _conv_matmul(wcat.astype(jnp.bfloat16), xcol.astype(jnp.bfloat16))

    # --- glue: per conv channel, place its Re-weight / Im-weight partial sums
    #     side by side on the lane axis so the forward DFT is one matmul (K=2W).
    a4 = (a.reshape(2, Co2, B, H, W).transpose(1, 2, 3, 0, 4)
           .reshape(Co2 * BH, 2 * W))

    # --- kernel 2: rFFT + BN + ReLU + irFFT, all channels in one step.
    out2d = pl.pallas_call(
        _spectral_kernel,
        out_shape=jax.ShapeDtypeStruct((Co * BH, W), jnp.float32),
        grid=(1,),
        in_specs=[pl.BlockSpec((Co2 * BH, 2 * W), lambda i: (0, 0)),
                  pl.BlockSpec((2 * W, Wf), lambda i: (0, 0)),
                  pl.BlockSpec((Co2, 1, 1), lambda i: (0, 0, 0)),
                  pl.BlockSpec((Co2, 1, 1), lambda i: (0, 0, 0)),
                  pl.BlockSpec((Wf, W), lambda i: (0, 0)),
                  pl.BlockSpec((Wf, W), lambda i: (0, 0))],
        out_specs=pl.BlockSpec((Co * BH, W), lambda i: (0, 0)),
    )(a4, fdft, gamma_p, beta_p, icr, ici)

    # (Co*B*H, W) -> (B, Co, H, W)
    return out2d.reshape(Co, B, H, W).transpose(1, 0, 2, 3)


def separable_fourier_unit(x, w_row, g_row, b_row, w_col, g_col, b_col,
                           kernel_size=3):
    """Forward pass of SeparableFourierUnit. x: (B, C, H, W) float32 (NCHW)."""
    rowwise = _branch_apply(x, w_row, g_row, b_row, kernel_size)
    colwise = _branch_apply(jnp.transpose(x, (0, 1, 3, 2)), w_col, g_col, b_col,
                            kernel_size)
    colwise = jnp.transpose(colwise, (0, 1, 3, 2))
    return jnp.concatenate([rowwise, colwise], axis=1)


# ----------------------------------------------------------------------------
# Pure-JAX reference (mirrors the PyTorch forward, training-mode BatchNorm)
# ----------------------------------------------------------------------------
def _ref_branch(x, w_full, gamma, beta, K):
    B, C, H, W = x.shape
    pad = K // 2
    ff = jnp.fft.rfft(x, norm="ortho")
    st = jnp.stack([ff.real, ff.imag], axis=2).reshape(B, 2 * C, H, -1)
    stp = jnp.pad(st, ((0, 0), (0, 0), (pad, pad), (0, 0)), mode="reflect")
    cols = jnp.stack([stp[:, :, dk:dk + H, :] for dk in range(K)], axis=2)
    conv = jnp.einsum("bckhf,ock->bohf", cols, w_full,
                      precision=jax.lax.Precision.HIGHEST)
    m = conv.mean(axis=(0, 2, 3), keepdims=True)
    v = ((conv - m) ** 2).mean(axis=(0, 2, 3), keepdims=True)
    y = (conv - m) / jnp.sqrt(v + 1e-5)
    y = y * gamma[None, :, None, None] + beta[None, :, None, None]
    y = jnp.maximum(y, 0.0)
    Co2 = w_full.shape[0]
    y = y.reshape(B, Co2 // 2, 2, H, -1)
    comp = y[:, :, 0] + 1j * y[:, :, 1]
    return jnp.fft.irfft(comp, n=W, norm="ortho")


def _ref_forward(x, w_row, g_row, b_row, w_col, g_col, b_col, K):
    rowwise = _ref_branch(x, w_row, g_row, b_row, K)
    colwise = _ref_branch(jnp.transpose(x, (0, 1, 3, 2)), w_col, g_col, b_col, K)
    colwise = jnp.transpose(colwise, (0, 1, 3, 2))
    return jnp.concatenate([rowwise, colwise], axis=1)


# ----------------------------------------------------------------------------
if __name__ == "__main__":
    B, C, H, W = 2, 4, 16, 16
    out_channels = 4
    K = 3

    key = jax.random.PRNGKey(0)
    kx, kr, kc = jax.random.split(key, 3)
    x = jax.random.normal(kx, (B, C, H, W), jnp.float32)

    row_out = out_channels // 2
    col_out = out_channels - row_out
    # Conv weights: (out*2, in*2, K) (trailing kernel-width-1 dim squeezed).
    w_row = jax.random.normal(kr, (row_out * 2, C * 2, K), jnp.float32) * 0.1
    w_col = jax.random.normal(kc, (col_out * 2, C * 2, K), jnp.float32) * 0.1
    # BatchNorm affine params as initialized by nn.BatchNorm2d (gamma=1, beta=0).
    g_row = jnp.ones((row_out * 2,), jnp.float32)
    b_row = jnp.zeros((row_out * 2,), jnp.float32)
    g_col = jnp.ones((col_out * 2,), jnp.float32)
    b_col = jnp.zeros((col_out * 2,), jnp.float32)

    out = separable_fourier_unit(x, w_row, g_row, b_row, w_col, g_col, b_col, K)
    out = jax.block_until_ready(out)
    assert out.shape == (B, out_channels, H, W), out.shape

    ref = _ref_forward(x, w_row, g_row, b_row, w_col, g_col, b_col, K)
    err = float(jnp.max(jnp.abs(out - ref)))
    # Tolerance sized for the bf16 conv-matmul inputs (perf-review item); the
    # all-f32 variant of this pipeline matches the reference to ~1e-3.
    assert err < 2.5e-2, f"max abs diff vs reference too large: {err}"

    print("KERNEL_OK")
</pallas_src>

<mosaic_0001>
module attributes {stable_mosaic.version = 11 : i64} {
  func.func @_conv_kernel(%arg0: i32, %arg1: memref<8x12xbf16, #tpu.memory_space<vmem>>, %arg2: memref<12x256xbf16, #tpu.memory_space<vmem>>, %arg3: memref<8x256xf32, #tpu.memory_space<vmem>>) attributes {dimension_semantics = [#tpu.dimension_semantics<parallel>], iteration_bounds = array<i64: 2>, scalar_prefetch = 0 : i64, scratch_operands = 0 : i64, tpu.core_type = #tpu.core_type<tc>, window_params = [{pipeline_mode = #tpu.pipeline_mode<synchronous>, transform_indices = @transform_0, window_bounds = array<i64: 8, 12>}, {transform_indices = @transform_1, window_bounds = array<i64: 12, 256>}, {transform_indices = @transform_2, window_bounds = array<i64: 8, 256>}]} {
    %c0 = arith.constant 0 : index
    %c0_0 = arith.constant 0 : index
    %0 = vector.load %arg1[%c0, %c0_0] : memref<8x12xbf16, #tpu.memory_space<vmem>>, vector<8x12xbf16>
    %c0_1 = arith.constant 0 : index
    %c0_2 = arith.constant 0 : index
    %1 = vector.load %arg2[%c0_1, %c0_2] : memref<12x256xbf16, #tpu.memory_space<vmem>>, vector<12x256xbf16>
    %cst = arith.constant dense<0.000000e+00> : vector<8x256xf32>
    %2 = tpu.matmul %0, %1, %cst {dimension_numbers = #tpu.dot_dimension_numbers<[1], [0], [0], [1], [0, 0, 1, 1], [], []>} : vector<8x12xbf16>, vector<12x256xbf16>, vector<8x256xf32> -> vector<8x256xf32>
    %c0_3 = arith.constant 0 : index
    %c0_4 = arith.constant 0 : index
    %3 = vector.load %arg3[%c0_3, %c0_4] : memref<8x256xf32, #tpu.memory_space<vmem>>, vector<8x256xf32>
    tpu.vector_store %arg3[%c0_3, %c0_4], %2 {strides = array<i32>} : memref<8x256xf32, #tpu.memory_space<vmem>>, vector<8x256xf32>,
    return
  }
  func.func @transform_0(%arg0: i32) -> (i32, i32) {
    %c0_i32 = arith.constant 0 : i32
    %c0_i32_0 = arith.constant 0 : i32
    %c0_i32_1 = arith.constant 0 : i32
    return %c0_i32, %c0_i32_0 : i32, i32
  }
  func.func @transform_1(%arg0: i32) -> (i32, i32) {
    %c0_i32 = arith.constant 0 : i32
    %c0_i32_0 = arith.constant 0 : i32
    return %c0_i32, %arg0 : i32, i32
  }
  func.func @transform_2(%arg0: i32) -> (i32, i32) {
    %c0_i32 = arith.constant 0 : i32
    %c0_i32_0 = arith.constant 0 : i32
    return %c0_i32, %arg0 : i32, i32
  }
}

</mosaic_0001>

<llo_original>
// kernel: tpu_custom_call.1
$region0: #{tpu_custom_call.1}
  #allocation0 [shape = 'u32[]', space=smem, size = 0x4, offset = 0x4, fixed_abs, tag = 'smem constant byte address 0x4 - core index']
  #allocation1 [shape = 'u32[144,128]{1,0:T(1,128)}', space=vmem, size = 0x12000, scoped, tag = 'internal scratch']
  %s0 = inlined_call_operand.hbm [shape: bf16[8,12], index: 0, kind: input, shape index: {}]
  %s1 = inlined_call_operand.hbm [shape: bf16[12,512], index: 1, kind: input, shape index: {}]
  %s2 = inlined_call_operand.hbm [shape: f32[8,512], index: 2, kind: output, shape index: {}]
  %s3 = sld [smem:[#allocation0]]
  $region49: #{tpu_custom_call.1} parent=0
    _
  %s5 = ssub.s32 1, %s3
  %s6 = scalar_select 0, %s5, %s3
  $region1: #{tpu_custom_call.1} parent=0
    #allocation2 [shape = 'u8[2048]{0}', space=vmem, size = 0x800, scoped, tag = 'input window, operand 0, single buffered']
    #allocation3 [shape = 's32[2]{0}', space=sflag, size = 0x8, scoped, tag = 'scoped memory for tpu_custom_call.1']
    #allocation4 [shape = 's32[2]{0}', space=sflag, size = 0x8, scoped, tag = 'scoped memory for tpu_custom_call.1']
    #allocation5 [shape = 'u8[16384]{0}', space=vmem, size = 0x4000, scoped, tag = 'input window, operand 1']
    #allocation6 [shape = 's32[2]{0}', space=sflag, size = 0x8, scoped, tag = 'scoped memory for tpu_custom_call.1']
    #allocation7 [shape = 'u8[16384]{0}', space=vmem, size = 0x4000, scoped, tag = 'output window, operand 0']
    %7 = vsyncpa [#allocation3], 0
    %8 = vsyncpa [#allocation6], 0
    %s9 = scalar_lea.sflag [#allocation6], 1
    %10 = vsyncpa %s9, 0
    %11 = vsyncpa [#allocation4], 0
    %s12 = scalar_lea.sflag [#allocation4], 1
    %13 = vsyncpa %s12, 0
    loop: start=0, step=1, limit=4
    $region2: #{tpu_custom_call.1} parent=1 // loop_pre_header
      _
    $region3: #{tpu_custom_call.1} parent=1 // loop_header
      %s15 = sphi 0, %s19
      %p16 = scmp.ge.s32.totalorder %s15, 4
      %s23 = sphi 0, %s23
      %s25 = sphi 0, %s23
      %s26 = sphi 0, %s25
      %s40 = sphi 0, %s26
      %s46 = sphi 0, %s48
      %s49 = sphi 0, %s46
      %s50 = sphi 0, %s49
      %s66 = sphi 0, %s50
      %s72 = sphi 0, %s74
      %s75 = sphi 0, %s72
      %s76 = sphi 0, %s75
      %s92 = sphi 0, %s76
    $region4: #{tpu_custom_call.1} parent=1 // loop_header_branch
      %18 = sbr.rel (%p16) target = $region8
    $region5: #{tpu_custom_call.1} parent=1 // loop_body
      %s20 = ssub.s32 %s15, 1
      %s21 = ssub.s32 %s15, 2
      %s22 = sadd.s32 %s15, 1
      %s24 = sadd.s32 %s23, 1
      %p27 = scmp.eq.s32.totalorder %s15, 1
      %p28 = scmp.ne.s32.totalorder %s23, %s25
      %p29 = scmp.eq.s32.totalorder %s15, 0
      %p30 = por %p28, %p29
      %p31 = scmp.ne.s32.totalorder %s23, %s25
      %p32 = scmp.eq.s32.totalorder %s20, 1
      %p33 = por %p31, %p32
      %p34 = scmp.ne.s32.totalorder %s25, %s26
      %p35 = scmp.eq.s32.totalorder %s20, 0
      %p36 = por %p34, %p35
      %p37 = scmp.ne.s32.totalorder %s25, %s26
      %p38 = scmp.eq.s32.totalorder %s21, 1
      %p39 = por %p37, %p38
      %p41 = scmp.ne.s32.totalorder %s26, %s40
      %p42 = scmp.eq.s32.totalorder %s21, 0
      %p43 = por %p41, %p42
      %s44 = ssub.s32 %s15, %s22
      %p45 = scmp.eq.s32.totalorder %s44, 0
      %s47 = sadd.s32 %s46, 1
      %s48 = scalar_select %p45, %s46, %s47
      %p51 = pneg %p45
      %p52 = scmp.eq.s32.totalorder %s15, 1
      %p53 = por %p51, %p52
      %p54 = scmp.ne.s32.totalorder %s46, %s49
      %p55 = scmp.eq.s32.totalorder %s15, 0
      %p56 = por %p54, %p55
      %p57 = scmp.ne.s32.totalorder %s46, %s49
      %p58 = scmp.eq.s32.totalorder %s20, 1
      %p59 = por %p57, %p58
      %p60 = scmp.ne.s32.totalorder %s49, %s50
      %p61 = scmp.eq.s32.totalorder %s20, 0
      %p62 = por %p60, %p61
      %p63 = scmp.ne.s32.totalorder %s49, %s50
      %p64 = scmp.eq.s32.totalorder %s21, 1
      %p65 = por %p63, %p64
      %p67 = scmp.ne.s32.totalorder %s50, %s66
      %p68 = scmp.eq.s32.totalorder %s21, 0
      %p69 = por %p67, %p68
      %s70 = ssub.s32 %s15, %s22
      %p71 = scmp.eq.s32.totalorder %s70, 0
      %s73 = sadd.s32 %s72, 1
      %s74 = scalar_select %p71, %s72, %s73
      %p77 = pneg %p71
      %p78 = scmp.eq.s32.totalorder %s15, 1
      %p79 = por %p77, %p78
      %p80 = scmp.ne.s32.totalorder %s72, %s75
      %p81 = scmp.eq.s32.totalorder %s15, 0
      %p82 = por %p80, %p81
      %p83 = scmp.ne.s32.totalorder %s72, %s75
      %p84 = scmp.eq.s32.totalorder %s20, 1
      %p85 = por %p83, %p84
      %p86 = scmp.ne.s32.totalorder %s75, %s76
      %p87 = scmp.eq.s32.totalorder %s20, 0
      %p88 = por %p86, %p87
      %p89 = scmp.ne.s32.totalorder %s75, %s76
      %p90 = scmp.eq.s32.totalorder %s21, 1
      %p91 = por %p89, %p90
      %p93 = scmp.ne.s32.totalorder %s76, %s92
      %p94 = scmp.eq.s32.totalorder %s21, 0
      %p95 = por %p93, %p94
      %p96 = scmp.le.s32.totalorder 1, %s15
      %p97 = scmp.lt.s32.totalorder %s15, 3
      %p98 = pnand %p96, %p97
      %p99 = pneg %p98
      // Predicated region
      $region9: #{tpu_custom_call.1} parent=5 // pred_check
        _
      $region10: #{tpu_custom_call.1} parent=5 // pred_check_branch
        %101 = sbr.rel (%p98) target = $region12
      $region11: #{tpu_custom_call.1} parent=5 // pred_region
        %s102 = ssub.s32 %s15, 1
        // Predicated region
        $region13: #{tpu_custom_call.1} parent=11 // pred_check
          %p103 = pneg %p36
        $region14: #{tpu_custom_call.1} parent=11 // pred_check_branch
          %105 = sbr.rel (%p103) target = $region16
        $region15: #{tpu_custom_call.1} parent=11 // pred_region
          %s107 = ssub.s32 64, 64
          %108 = vsyncadd [#allocation3], %s107
          %s110 = sshll.u32 [#allocation2], 4
          %s111 = int_to_ptr.vmem [resolvable:$true] %s110
          %113 = dma.hbm_to_vmem [thread:$0]  %s0, 64, %s111, [#allocation3]
        $region16: #{tpu_custom_call.1} parent=11 // pred_fallthru
          _
      $region12: #{tpu_custom_call.1} parent=5 // pred_fallthru
        _
      %p114 = scmp.lt.s32.totalorder %s15, 2
      // Predicated region
      $region17: #{tpu_custom_call.1} parent=5 // pred_check
        %p115 = pneg %p114
      $region18: #{tpu_custom_call.1} parent=5 // pred_check_branch
        %117 = sbr.rel (%p115) target = $region20
      $region19: #{tpu_custom_call.1} parent=5 // pred_region
        // Predicated region
        $region21: #{tpu_custom_call.1} parent=19 // pred_check
          %p118 = pneg %p56
        $region22: #{tpu_custom_call.1} parent=19 // pred_check_branch
          %120 = sbr.rel (%p118) target = $region24
        $region23: #{tpu_custom_call.1} parent=19 // pred_region
          %s121 = sand.u32 %s46, 1
          %s122 = scalar_lea.sflag [#allocation6], %s121
          %s123 = sand.u32 %s46, 1
          %s124 = smul.addr %s123, 16
          %s125 = scalar_lea.vmem [#allocation5], %s124
          %s126 = smul.u32 2, %s15
          %s128 = ssub.s32 256, 256
          %129 = vsyncadd %s122, %s128
          %s130 = smul.addr %s126, 64
          %s131 = scalar_lea.hbm %s1, %s130
          %s132 = sshll.u32 %s125, 4
          %s133 = int_to_ptr.vmem [resolvable:$true] %s132
          %138 = dma.hbm_to_vmem [thread:$0]  %s131, 256, %s133, %s122, 256, 128, 8
        $region24: #{tpu_custom_call.1} parent=19 // pred_fallthru
          _
      $region20: #{tpu_custom_call.1} parent=5 // pred_fallthru
        _
      %p139 = scmp.le.s32.totalorder 1, %s15
      %p140 = scmp.lt.s32.totalorder %s15, 3
      %p141 = pnand %p139, %p140
      %p142 = pneg %p141
      // Predicated region
      $region25: #{tpu_custom_call.1} parent=5 // pred_check
        _
      $region26: #{tpu_custom_call.1} parent=5 // pred_check_branch
        %144 = sbr.rel (%p141) target = $region28
      $region27: #{tpu_custom_call.1} parent=5 // pred_region
        %s145 = ssub.s32 %s15, 1
        // Predicated region
        $region29: #{tpu_custom_call.1} parent=27 // pred_check
          %p146 = pneg %p36
        $region30: #{tpu_custom_call.1} parent=27 // pred_check_branch
          %148 = sbr.rel (%p146) target = $region32
        $region31: #{tpu_custom_call.1} parent=27 // pred_region
          %149 = dma.done [#allocation3], 64
        $region32: #{tpu_custom_call.1} parent=27 // pred_fallthru
          _
        %s150 = sand.u32 %s49, 1
        %s151 = scalar_lea.sflag [#allocation6], %s150
        %s152 = sand.u32 %s49, 1
        %s153 = smul.addr %s152, 16
        %s154 = scalar_lea.vmem [#allocation5], %s153
        // Predicated region
        $region33: #{tpu_custom_call.1} parent=27 // pred_check
          %p155 = pneg %p62
        $region34: #{tpu_custom_call.1} parent=27 // pred_check_branch
          %157 = sbr.rel (%p155) target = $region36
        $region35: #{tpu_custom_call.1} parent=27 // pred_region
          %158 = dma.done %s151, 256
        $region36: #{tpu_custom_call.1} parent=27 // pred_fallthru
          _
        %p159 = pneg %p36
        %p160 = pneg %p33
        %s161 = sand.u32 %s49, 1
        %s162 = scalar_lea.sflag [#allocation6], %s161
        %s163 = sand.u32 %s49, 1
        %s164 = smul.addr %s163, 16
        %s165 = scalar_lea.vmem [#allocation5], %s164
        %p166 = pneg %p62
        %p167 = pneg %p59
        %p168 = pneg %p88
        %p169 = pneg %p85
        %s170 = sand.u32 %s75, 1
        %s171 = scalar_lea.sflag [#allocation4], %s170
        %s172 = sand.u32 %s75, 1
        %s173 = smul.addr %s172, 16
        %s174 = scalar_lea.vmem [#allocation7], %s173
        %s175 = smul.u32 2, %s20
        %s176 = smul.u32 2, %s20
        %v178 = vld [vmem:[#allocation2] sm:$0xf]
        %v179 = vld [vmem:[%s154] sm:$0xff]
        %v180 = vld [vmem:[%s154 + $0x8] sm:$0x33]
        %v183 = vunpack.c.l.b16 %v179
        %v184 = vunpack.c.h.b16 %v179
        %v185 = vunpack.c.l.b16 %v180
        %v186 = vunpack.c.h.b16 %v180
        %v187 = vpack.c.b16 %v185, %v183
        %v188 = vpack.c.b16 %v186, %v184
        %vm189 = vcmask 97280
        %v191 = vsel %vm189, %v178, 0
        %vm193 = vcmask 1045504
        %v195 = vsel %vm193, %v187, 0
        %v198 = vsel %vm193, %v188, 0
        %200 = vmatprep.subr.bf16.mxu0 %v198
        %201 = vmatpush1.bf16.msra.mxu0 %v195
        %202 = vmatprep.subr.bf16.mxu0 0
        %203 = vmatpush1.bf16.msra.mxu0 0
        %204 = vmatprep.subr.bf16.mxu0 0
        %205 = vmatpush1.bf16.msra.mxu0 0
        %206 = vmatprep.subr.bf16.mxu0 0
        %207 = vmatpush1.bf16.msra.mxu0 0
        %208 = vmatprep.subr.bf16.mxu0 0
        %209 = vmatpush1.bf16.msra.mxu0 0
        %210 = vmatprep.subr.bf16.mxu0 0
        %211 = vmatpush1.bf16.msra.mxu0 0
        %212 = vmatprep.subr.bf16.mxu0 0
        %213 = vmatpush1.bf16.msra.mxu0 0
        %214 = vmatprep.subr.bf16.mxu0 0
        %215 = vmatpush1.bf16.msra.mxu0 0
        %216 = vmatprep.subr.bf16.mxu0 0
        %217 = vmatpush1.bf16.msra.mxu0 0
        %218 = vmatprep.subr.bf16.mxu0 0
        %219 = vmatpush1.bf16.msra.mxu0 0
        %220 = vmatprep.subr.bf16.mxu0 0
        %221 = vmatpush1.bf16.msra.mxu0 0
        %222 = vmatprep.subr.bf16.mxu0 0
        %223 = vmatpush1.bf16.msra.mxu0 0
        %224 = vmatprep.subr.bf16.mxu0 0
        %225 = vmatpush1.bf16.msra.mxu0 0
        %226 = vmatprep.subr.bf16.mxu0 0
        %227 = vmatpush1.bf16.msra.mxu0 0
        %228 = vmatprep.subr.bf16.mxu0 0
        %229 = vmatpush1.bf16.msra.mxu0 0
        %230 = vmatprep.subr.bf16.mxu0 0
        %231 = vmatpush1.bf16.msra.mxu0 0
        %232 = vmatprep.mubr.bf16.mxu0 0
        %233 = vmatmul.mubr.bf16.gmra.mrb[0].mxu0 %v191
        %v234 = vpop.f32.mrb[0].mxu0
        %v235 = vadd.f32 0.0, %v234
        %v236 = vpop.f32.mrb[0].mxu0
        %v237 = vadd.f32 0.0, %v236
        %v238 = vpop.f32.mrb[0].mxu0
        %v239 = vpop.f32.mrb[0].mxu0
        %240 = vdwg.mxu0
        %241 = vst [vmem:[%s174] sm:$0xff] %v235
        %242 = vst [vmem:[%s174 + $0x8] sm:$0xff] %v237
        %s243 = sand.u32 %s75, 1
        %s244 = scalar_lea.sflag [#allocation4], %s243
        %s245 = sand.u32 %s75, 1
        %s246 = smul.addr %s245, 16
        %s247 = scalar_lea.vmem [#allocation7], %s246
        // Predicated region
        $region37: #{tpu_custom_call.1} parent=27 // pred_check
          %p248 = pneg %p85
        $region38: #{tpu_custom_call.1} parent=27 // pred_check_branch
          %250 = sbr.rel (%p248) target = $region40
        $region39: #{tpu_custom_call.1} parent=27 // pred_region
          %s251 = smul.u32 2, %s20
          %s253 = ssub.s32 256, 256
          %254 = vsyncadd %s244, %s253
          %s255 = smul.addr %s251, 128
          %s256 = scalar_lea.hbm %s2, %s255
          %s258 = sshll.u32 %s247, 4
          %s259 = int_to_ptr.vmem [resolvable:$true] %s258
          %261 = dma.vmem_to_hbm [thread:$0]  %s259, 256, %s256, %s244
        $region40: #{tpu_custom_call.1} parent=27 // pred_fallthru
          _
      $region28: #{tpu_custom_call.1} parent=5 // pred_fallthru
        _
      %p262 = scmp.le.s32.totalorder 2, %s15
      // Predicated region
      $region41: #{tpu_custom_call.1} parent=5 // pred_check
        %p263 = pneg %p262
      $region42: #{tpu_custom_call.1} parent=5 // pred_check_branch
        %265 = sbr.rel (%p263) target = $region44
      $region43: #{tpu_custom_call.1} parent=5 // pred_region
        %s266 = ssub.s32 %s15, 2
        // Predicated region
        $region45: #{tpu_custom_call.1} parent=43 // pred_check
          %p267 = pneg %p91
        $region46: #{tpu_custom_call.1} parent=43 // pred_check_branch
          %269 = sbr.rel (%p267) target = $region48
        $region47: #{tpu_custom_call.1} parent=43 // pred_region
          %s270 = sand.u32 %s76, 1
          %s271 = scalar_lea.sflag [#allocation4], %s270
          %s272 = sand.u32 %s76, 1
          %s273 = smul.addr %s272, 16
          %s274 = scalar_lea.vmem [#allocation7], %s273
          %275 = dma.done %s271, 256
        $region48: #{tpu_custom_call.1} parent=43 // pred_fallthru
          _
      $region44: #{tpu_custom_call.1} parent=5 // pred_fallthru
        _
    $region6: #{tpu_custom_call.1} parent=1 // loop_footer
      %s19 = sadd.s32 1, %s15
    $region7: #{tpu_custom_call.1} parent=1 // loop_footer_branch
      %14 = sbr.rel target = $region3
    $region8: #{tpu_custom_call.1} parent=1 // loop_exit
      _
    %276 = vsyncpa [#allocation3], 1
    %s277 = scalar_lea.sflag [#allocation3], 1
    %278 = vsyncpa %s277, 1
    %279 = vsyncpa [#allocation6], 1
    %s280 = scalar_lea.sflag [#allocation6], 1
    %281 = vsyncpa %s280, 1
    %282 = vsyncpa [#allocation4], 1
    %s283 = scalar_lea.sflag [#allocation4], 1
    %284 = vsyncpa %s283, 1

</llo_original>
